<compile_context>
chip_gen: v7x
topology: tpu7x:2x2x1
jax: 0.10.0
libtpu: 0.0.40
codegen_flags: <defaults>
</compile_context>

<pallas_src>
import jax
import jax.numpy as jnp
from jax.experimental import pallas as pl
from jax.experimental.pallas import tpu as pltpu

_LANE = 128
_SUBLANE = 8
_LANE_TARGET = 2048


def _cdiv(a: int, b: int) -> int:
    return -(-a // b)


def _per_buffer_budget_bytes() -> int:
    """Per-tile byte budget, derived from the chip's VMEM capacity."""
    cap = 64 << 20  # conservative default: v7x per-TensorCore VMEM
    try:
        cap = int(pltpu.get_tpu_info().vmem_capacity_bytes)
    except Exception:
        pass
    # ~6 live buffers (x, out, prompt; each double-buffered) must fit scoped VMEM.
    return max(1 << 20, min(6 << 20, cap // 16))


def _choose_lane_tile(f: int, lane_target: int = _LANE_TARGET,
                      min_rep: int = _SUBLANE) -> int:
    """Largest lane tile that divides f exactly (so no pad/slice is ever needed)."""
    if f % _LANE != 0:
        # Non-128-aligned feature size: a full-extent lane block is always legal.
        # (For astronomically large, non-aligned f this makes one big block;
        #  acceptable for this rare case.)
        return f
    # Prefer a tile that leaves >= min_rep feature rows per image so the sublane
    # dimension of each block is dense even when the batch is tiny.
    cap = min(lane_target, f // min_rep)
    cap -= cap % _LANE
    t = cap
    while t >= _LANE:
        if f % t == 0:
            return t
        t -= _LANE
    # Fall back: largest multiple-of-128 divisor of f <= lane_target.
    t = min(lane_target, f)
    t -= t % _LANE
    while f % t != 0:
        t -= _LANE
    return t


def _choose_row_tile(rep: int, row_budget: int) -> int:
    """Second-minor (feature-row) tile: multiple of 8, or the full extent."""
    row_budget = max(1, row_budget)
    if rep <= row_budget:
        return rep                                  # full extent: always legal
    t = max(_SUBLANE, row_budget - row_budget % _SUBLANE)
    for cand in range(t, _SUBLANE - 1, -_SUBLANE):  # prefer an exact divisor
        if rep % cand == 0:
            return cand
    return t            # ragged last block: Pallas masks the partial writeback


def _add_prompt_kernel(x_ref, p_ref, o_ref):
    # x_ref: (tile_n, tile_r, tile_f)   batch x feature-rows x lanes
    # p_ref: (1,      tile_r, tile_f)   shared prompt slice (broadcast over batch)
    o_ref[...] = x_ref[...] + p_ref[...]


def pad_prompter_forward(x, pad_up, pad_down, pad_left, pad_right):
    """Reproduces PadPrompter.forward.

    x:         (N, 3, H, W)
    pad_up:    (1, 3, pad, W)
    pad_down:  (1, 3, pad, W)
    pad_left:  (1, 3, H - 2*pad, pad)
    pad_right: (1, 3, H - 2*pad, pad)
    """
    n, c, h, w = x.shape
    pad = pad_up.shape[2]
    base_size = h - 2 * pad
    dt = x.dtype

    # ---- glue: assemble the (1, c, h, w) prompt frame (tiny, one-off XLA concat)
    base = jnp.zeros((1, c, base_size, base_size), dtype=dt)
    middle = jnp.concatenate(
        [pad_left.astype(dt), base, pad_right.astype(dt)], axis=3)
    prompt = jnp.concatenate(
        [pad_up.astype(dt), middle, pad_down.astype(dt)], axis=2)

    # ---- lane-dense 3-D views (contiguous reshape: no data movement)
    f = c * h * w
    itemsize = jnp.dtype(dt).itemsize
    tile_f = _choose_lane_tile(f)
    rep = f // tile_f
    x3 = x.reshape(n, rep, tile_f)
    p3 = prompt.reshape(1, rep, tile_f)

    # ---- tile sizing against the per-generation VMEM budget (no jnp.pad anywhere)
    budget = _per_buffer_budget_bytes()
    row_budget = max(1, budget // (tile_f * itemsize))
    tile_r = _choose_row_tile(rep, row_budget)
    if tile_r == rep:
        tile_n = max(1, min(n, row_budget // rep))   # pack several images per block
    else:
        tile_n = 1

    grid_r = _cdiv(rep, tile_r)
    grid_n = _cdiv(n, tile_n)
    # Guarantee >= 2 blocks whenever possible so a v7x megacore can shard the grid.
    if grid_r * grid_n < 2 and n >= 2:
        tile_n = _cdiv(n, 2)
        grid_n = _cdiv(n, tile_n)

    block_bytes = tile_n * tile_r * tile_f * itemsize
    prompt_bytes = tile_r * tile_f * itemsize
    need = 4 * block_bytes + 2 * prompt_bytes        # double-buffered x, out, prompt
    vmem_limit = int(max(32 << 20, min(48 << 20, need * 3 // 2), need + (1 << 20)))

    out3 = pl.pallas_call(
        _add_prompt_kernel,
        out_shape=jax.ShapeDtypeStruct((n, rep, tile_f), dt),
        grid_spec=pltpu.PrefetchScalarGridSpec(
            num_scalar_prefetch=0,
            grid=(grid_r, grid_n),          # feature-row tiles outer, batch inner
            in_specs=[
                # x tile: changes every grid step.
                pl.BlockSpec((tile_n, tile_r, tile_f), lambda j, i: (i, j, 0)),
                # prompt tile: depends only on the outer axis -> stays VMEM-resident
                # across the whole inner (batch) sweep, DMA'd once per row tile.
                pl.BlockSpec((1, tile_r, tile_f), lambda j, i: (0, j, 0)),
            ],
            out_specs=pl.BlockSpec((tile_n, tile_r, tile_f), lambda j, i: (i, j, 0)),
        ),
        compiler_params=pltpu.CompilerParams(
            dimension_semantics=("parallel", "parallel"),
            vmem_limit_bytes=vmem_limit,
        ),
    )(x3, p3)

    return out3.reshape(n, c, h, w)


if __name__ == "__main__":
    key = jax.random.PRNGKey(0)
    k_x1, k_up, k_down, k_left, k_right, k_x2 = jax.random.split(key, 6)

    def make_inputs(kx, batch, image_size, pad_size):
        channels = 3                       # fixed at 3 by the module
        base_size = image_size - 2 * pad_size
        x = jax.random.normal(kx, (batch, channels, image_size, image_size), jnp.float32)
        p_up = jax.random.normal(k_up, (1, channels, pad_size, image_size), jnp.float32)
        p_down = jax.random.normal(k_down, (1, channels, pad_size, image_size), jnp.float32)
        p_left = jax.random.normal(k_left, (1, channels, base_size, pad_size), jnp.float32)
        p_right = jax.random.normal(k_right, (1, channels, base_size, pad_size), jnp.float32)
        return x, p_up, p_down, p_left, p_right

    def reference(x, p_up, p_down, p_left, p_right):
        n, c, h, w = x.shape
        pad = p_up.shape[2]
        base = jnp.zeros((1, c, h - 2 * pad, w - 2 * pad), x.dtype)
        prm = jnp.concatenate([p_left, base, p_right], axis=3)
        prm = jnp.concatenate([p_up, prm, p_down], axis=2)
        return x + jnp.concatenate([prm] * n, axis=0)

    # Case 1: module-sized small example (batch=2, 3x16x16, pad=2).
    args1 = make_inputs(k_x1, batch=2, image_size=16, pad_size=2)
    out1 = jax.block_until_ready(pad_prompter_forward(*args1))
    assert out1.shape == args1[0].shape
    assert jnp.allclose(out1, reference(*args1), atol=1e-6), "mismatch vs reference (16x16)"

    # Case 2: exercises the dense-sublane path (rep >= 8, multi-image blocks).
    args2 = make_inputs(k_x2, batch=4, image_size=32, pad_size=3)
    out2 = jax.block_until_ready(pad_prompter_forward(*args2))
    assert out2.shape == args2[0].shape
    assert jnp.allclose(out2, reference(*args2), atol=1e-6), "mismatch vs reference (32x32)"

    print("KERNEL_OK")
</pallas_src>

<mosaic_0001>
module attributes {stable_mosaic.version = 11 : i64} {
  func.func @_add_prompt_kernel(%arg0: i32, %arg1: i32, %arg2: memref<1x1x768xf32, #tpu.memory_space<vmem>>, %arg3: memref<1x1x768xf32, #tpu.memory_space<vmem>>, %arg4: memref<1x1x768xf32, #tpu.memory_space<vmem>>) attributes {dimension_semantics = [#tpu.dimension_semantics<parallel>, #tpu.dimension_semantics<parallel>], iteration_bounds = array<i64: 1, 2>, scalar_prefetch = 0 : i64, scratch_operands = 0 : i64, tpu.core_type = #tpu.core_type<tc>, window_params = [{transform_indices = @transform_0, window_bounds = array<i64: 1, 1, 768>}, {transform_indices = @transform_1, window_bounds = array<i64: 1, 1, 768>}, {transform_indices = @transform_2, window_bounds = array<i64: 1, 1, 768>}]} {
    %c0 = arith.constant 0 : index
    %c0_0 = arith.constant 0 : index
    %c0_1 = arith.constant 0 : index
    %0 = vector.load %arg2[%c0, %c0_0, %c0_1] : memref<1x1x768xf32, #tpu.memory_space<vmem>>, vector<1x1x768xf32>
    %c0_2 = arith.constant 0 : index
    %c0_3 = arith.constant 0 : index
    %c0_4 = arith.constant 0 : index
    %1 = vector.load %arg3[%c0_2, %c0_3, %c0_4] : memref<1x1x768xf32, #tpu.memory_space<vmem>>, vector<1x1x768xf32>
    %2 = arith.addf %0, %1 : vector<1x1x768xf32>
    %c0_5 = arith.constant 0 : index
    %c0_6 = arith.constant 0 : index
    %c0_7 = arith.constant 0 : index
    %3 = vector.load %arg4[%c0_5, %c0_6, %c0_7] : memref<1x1x768xf32, #tpu.memory_space<vmem>>, vector<1x1x768xf32>
    tpu.vector_store %arg4[%c0_5, %c0_6, %c0_7], %2 {strides = array<i32>} : memref<1x1x768xf32, #tpu.memory_space<vmem>>, vector<1x1x768xf32>,
    return
  }
  func.func @transform_0(%arg0: i32, %arg1: i32) -> (i32, i32, i32) {
    %c0_i32 = arith.constant 0 : i32
    %c0_i32_0 = arith.constant 0 : i32
    return %arg1, %arg0, %c0_i32 : i32, i32, i32
  }
  func.func @transform_1(%arg0: i32, %arg1: i32) -> (i32, i32, i32) {
    %c0_i32 = arith.constant 0 : i32
    %c0_i32_0 = arith.constant 0 : i32
    %c0_i32_1 = arith.constant 0 : i32
    return %c0_i32, %arg0, %c0_i32_0 : i32, i32, i32
  }
  func.func @transform_2(%arg0: i32, %arg1: i32) -> (i32, i32, i32) {
    %c0_i32 = arith.constant 0 : i32
    %c0_i32_0 = arith.constant 0 : i32
    return %arg1, %arg0, %c0_i32 : i32, i32, i32
  }
}

</mosaic_0001>

<llo_original>
// kernel: tpu_custom_call.1
$region0: #{tpu_custom_call.1}
  #allocation0 [shape = 'u32[]', space=smem, size = 0x4, offset = 0x4, fixed_abs, tag = 'smem constant byte address 0x4 - core index']
  #allocation1 [shape = 'u32[144,128]{1,0:T(1,128)}', space=vmem, size = 0x12000, scoped, tag = 'internal scratch']
  %s0 = inlined_call_operand.hbm [shape: f32[2,1,768], index: 0, kind: input, shape index: {}]
  %s1 = inlined_call_operand.hbm [shape: f32[1,1,768], index: 1, kind: input, shape index: {}]
  %s2 = inlined_call_operand.hbm [shape: f32[2,1,768], index: 2, kind: output, shape index: {}]
  %s3 = sld [smem:[#allocation0]]
  $region49: #{tpu_custom_call.1} parent=0
    _
  %s5 = ssub.s32 1, %s3
  %s6 = scalar_select 0, %s5, %s3
  $region1: #{tpu_custom_call.1} parent=0
    #allocation2 [shape = 'u8[6144]{0}', space=vmem, size = 0x1800, scoped, tag = 'input window, operand 0']
    #allocation3 [shape = 's32[2]{0}', space=sflag, size = 0x8, scoped, tag = 'scoped memory for tpu_custom_call.1']
    #allocation4 [shape = 's32[2]{0}', space=sflag, size = 0x8, scoped, tag = 'scoped memory for tpu_custom_call.1']
    #allocation5 [shape = 'u8[3072]{0}', space=vmem, size = 0xc00, scoped, tag = 'input window, operand 1, single buffered']
    #allocation6 [shape = 's32[1]{0}', space=sflag, size = 0x4, scoped, tag = 'scoped memory for tpu_custom_call.1']
    #allocation7 [shape = 'u8[6144]{0}', space=vmem, size = 0x1800, scoped, tag = 'output window, operand 0']
    %7 = vsyncpa [#allocation3], 0
    %s8 = scalar_lea.sflag [#allocation3], 1
    %9 = vsyncpa %s8, 0
    %10 = vsyncpa [#allocation6], 0
    %11 = vsyncpa [#allocation4], 0
    %s12 = scalar_lea.sflag [#allocation4], 1
    %13 = vsyncpa %s12, 0
    loop: start=0, step=1, limit=4
    $region2: #{tpu_custom_call.1} parent=1 // loop_pre_header
      _
    $region3: #{tpu_custom_call.1} parent=1 // loop_header
      %s15 = sphi 0, %s19
      %p16 = scmp.ge.s32.totalorder %s15, 4
      %s22 = sphi 0, %s34
      %s23 = sphi 0, %s30
      %s24 = sphi 0, %s22
      %s25 = sphi 0, %s23
      %s26 = sphi 0, %s24
      %s27 = sphi 0, %s25
      %s39 = sphi 0, %s41
      %s42 = sphi 0, %s39
      %s43 = sphi 0, %s42
      %s59 = sphi 0, %s43
      %s65 = sphi 0, %s67
      %s68 = sphi 0, %s65
      %s69 = sphi 0, %s68
      %s85 = sphi 0, %s69
      %s93 = sphi 0, %s95
      %s96 = sphi 0, %s93
      %s97 = sphi 0, %s96
      %s113 = sphi 0, %s97
    $region4: #{tpu_custom_call.1} parent=1 // loop_header_branch
      %18 = sbr.rel (%p16) target = $region8
    $region5: #{tpu_custom_call.1} parent=1 // loop_body
      %s20 = ssub.s32 %s15, 1
      %s21 = ssub.s32 %s15, 2
      %s28 = sadd.s32 1, %s23
      %p29 = scmp.ge.s32.totalorder %s28, 2
      %s30 = scalar_select %p29, 0, %s28
      %s31 = sadd.s32 1, %s22
      %s32 = scalar_select %p29, %s31, %s22
      %p33 = scmp.ge.s32.totalorder %s32, 1
      %s34 = scalar_select %p33, 0, %s32
      %s35 = ssub.s32 %s23, %s30
      %s36 = ssub.s32 %s22, %s34
      %s37 = sor.u32 %s35, %s36
      %p38 = scmp.eq.s32.totalorder %s37, 0
      %s40 = sadd.s32 %s39, 1
      %s41 = scalar_select %p38, %s39, %s40
      %p44 = pneg %p38
      %p45 = scmp.eq.s32.totalorder %s15, 1
      %p46 = por %p44, %p45
      %p47 = scmp.ne.s32.totalorder %s39, %s42
      %p48 = scmp.eq.s32.totalorder %s15, 0
      %p49 = por %p47, %p48
      %p50 = scmp.ne.s32.totalorder %s39, %s42
      %p51 = scmp.eq.s32.totalorder %s20, 1
      %p52 = por %p50, %p51
      %p53 = scmp.ne.s32.totalorder %s42, %s43
      %p54 = scmp.eq.s32.totalorder %s20, 0
      %p55 = por %p53, %p54
      %p56 = scmp.ne.s32.totalorder %s42, %s43
      %p57 = scmp.eq.s32.totalorder %s21, 1
      %p58 = por %p56, %p57
      %p60 = scmp.ne.s32.totalorder %s43, %s59
      %p61 = scmp.eq.s32.totalorder %s21, 0
      %p62 = por %p60, %p61
      %s63 = ssub.s32 %s22, %s34
      %p64 = scmp.eq.s32.totalorder %s63, 0
      %s66 = sadd.s32 %s65, 1
      %s67 = scalar_select %p64, %s65, %s66
      %p70 = pneg %p64
      %p71 = scmp.eq.s32.totalorder %s15, 1
      %p72 = por %p70, %p71
      %p73 = scmp.ne.s32.totalorder %s65, %s68
      %p74 = scmp.eq.s32.totalorder %s15, 0
      %p75 = por %p73, %p74
      %p76 = scmp.ne.s32.totalorder %s65, %s68
      %p77 = scmp.eq.s32.totalorder %s20, 1
      %p78 = por %p76, %p77
      %p79 = scmp.ne.s32.totalorder %s68, %s69
      %p80 = scmp.eq.s32.totalorder %s20, 0
      %p81 = por %p79, %p80
      %p82 = scmp.ne.s32.totalorder %s68, %s69
      %p83 = scmp.eq.s32.totalorder %s21, 1
      %p84 = por %p82, %p83
      %p86 = scmp.ne.s32.totalorder %s69, %s85
      %p87 = scmp.eq.s32.totalorder %s21, 0
      %p88 = por %p86, %p87
      %s89 = ssub.s32 %s23, %s30
      %s90 = ssub.s32 %s22, %s34
      %s91 = sor.u32 %s89, %s90
      %p92 = scmp.eq.s32.totalorder %s91, 0
      %s94 = sadd.s32 %s93, 1
      %s95 = scalar_select %p92, %s93, %s94
      %p98 = pneg %p92
      %p99 = scmp.eq.s32.totalorder %s15, 1
      %p100 = por %p98, %p99
      %p101 = scmp.ne.s32.totalorder %s93, %s96
      %p102 = scmp.eq.s32.totalorder %s15, 0
      %p103 = por %p101, %p102
      %p104 = scmp.ne.s32.totalorder %s93, %s96
      %p105 = scmp.eq.s32.totalorder %s20, 1
      %p106 = por %p104, %p105
      %p107 = scmp.ne.s32.totalorder %s96, %s97
      %p108 = scmp.eq.s32.totalorder %s20, 0
      %p109 = por %p107, %p108
      %p110 = scmp.ne.s32.totalorder %s96, %s97
      %p111 = scmp.eq.s32.totalorder %s21, 1
      %p112 = por %p110, %p111
      %p114 = scmp.ne.s32.totalorder %s97, %s113
      %p115 = scmp.eq.s32.totalorder %s21, 0
      %p116 = por %p114, %p115
      %p117 = scmp.le.s32.totalorder 1, %s15
      %p118 = scmp.lt.s32.totalorder %s15, 3
      %p119 = pnand %p117, %p118
      %p120 = pneg %p119
      // Predicated region
      $region9: #{tpu_custom_call.1} parent=5 // pred_check
        _
      $region10: #{tpu_custom_call.1} parent=5 // pred_check_branch
        %122 = sbr.rel (%p119) target = $region12
      $region11: #{tpu_custom_call.1} parent=5 // pred_region
        %s123 = ssub.s32 %s15, 1
        // Predicated region
        $region13: #{tpu_custom_call.1} parent=11 // pred_check
          %p124 = pneg %p81
        $region14: #{tpu_custom_call.1} parent=11 // pred_check_branch
          %126 = sbr.rel (%p124) target = $region16
        $region15: #{tpu_custom_call.1} parent=11 // pred_region
          %s128 = ssub.s32 96, 96
          %129 = vsyncadd [#allocation6], %s128
          %s130 = smul.addr %s24, 6
          %s131 = smul.addr %s130, 16
          %s132 = scalar_lea.hbm %s1, %s131
          %s134 = sshll.u32 [#allocation5], 4
          %s135 = int_to_ptr.vmem [resolvable:$true] %s134
          %137 = dma.hbm_to_vmem [thread:$0]  %s132, 96, %s135, [#allocation6]
        $region16: #{tpu_custom_call.1} parent=11 // pred_fallthru
          _
      $region12: #{tpu_custom_call.1} parent=5 // pred_fallthru
        _
      %p138 = scmp.lt.s32.totalorder %s15, 2
      // Predicated region
      $region17: #{tpu_custom_call.1} parent=5 // pred_check
        %p139 = pneg %p138
      $region18: #{tpu_custom_call.1} parent=5 // pred_check_branch
        %141 = sbr.rel (%p139) target = $region20
      $region19: #{tpu_custom_call.1} parent=5 // pred_region
        // Predicated region
        $region21: #{tpu_custom_call.1} parent=19 // pred_check
          %p142 = pneg %p49
        $region22: #{tpu_custom_call.1} parent=19 // pred_check_branch
          %144 = sbr.rel (%p142) target = $region24
        $region23: #{tpu_custom_call.1} parent=19 // pred_region
          %s145 = sand.u32 %s39, 1
          %s146 = scalar_lea.sflag [#allocation3], %s145
          %s147 = sand.u32 %s39, 1
          %s148 = smul.addr %s147, 6
          %s149 = scalar_lea.vmem [#allocation2], %s148
          %s151 = ssub.s32 96, 96
          %152 = vsyncadd %s146, %s151
          %s153 = smul.addr %s22, 6
          %s154 = smul.addr %s23, 6
          %s155 = sadd.s32 %s153, %s154
          %s156 = smul.addr %s155, 16
          %s157 = scalar_lea.hbm %s0, %s156
          %s159 = sshll.u32 %s149, 4
          %s160 = int_to_ptr.vmem [resolvable:$true] %s159
          %162 = dma.hbm_to_vmem [thread:$0]  %s157, 96, %s160, %s146
        $region24: #{tpu_custom_call.1} parent=19 // pred_fallthru
          _
      $region20: #{tpu_custom_call.1} parent=5 // pred_fallthru
        _
      %p163 = scmp.le.s32.totalorder 1, %s15
      %p164 = scmp.lt.s32.totalorder %s15, 3
      %p165 = pnand %p163, %p164
      %p166 = pneg %p165
      // Predicated region
      $region25: #{tpu_custom_call.1} parent=5 // pred_check
        _
      $region26: #{tpu_custom_call.1} parent=5 // pred_check_branch
        %168 = sbr.rel (%p165) target = $region28
      $region27: #{tpu_custom_call.1} parent=5 // pred_region
        %s169 = ssub.s32 %s15, 1
        %s170 = sand.u32 %s42, 1
        %s171 = scalar_lea.sflag [#allocation3], %s170
        %s172 = sand.u32 %s42, 1
        %s173 = smul.addr %s172, 6
        %s174 = scalar_lea.vmem [#allocation2], %s173
        // Predicated region
        $region29: #{tpu_custom_call.1} parent=27 // pred_check
          %p175 = pneg %p55
        $region30: #{tpu_custom_call.1} parent=27 // pred_check_branch
          %177 = sbr.rel (%p175) target = $region32
        $region31: #{tpu_custom_call.1} parent=27 // pred_region
          %178 = dma.done %s171, 96
        $region32: #{tpu_custom_call.1} parent=27 // pred_fallthru
          _
        // Predicated region
        $region33: #{tpu_custom_call.1} parent=27 // pred_check
          %p179 = pneg %p81
        $region34: #{tpu_custom_call.1} parent=27 // pred_check_branch
          %181 = sbr.rel (%p179) target = $region36
        $region35: #{tpu_custom_call.1} parent=27 // pred_region
          %182 = dma.done [#allocation6], 96
        $region36: #{tpu_custom_call.1} parent=27 // pred_fallthru
          _
        %s183 = sand.u32 %s42, 1
        %s184 = scalar_lea.sflag [#allocation3], %s183
        %s185 = sand.u32 %s42, 1
        %s186 = smul.addr %s185, 6
        %s187 = scalar_lea.vmem [#allocation2], %s186
        %p188 = pneg %p55
        %p189 = pneg %p52
        %p190 = pneg %p81
        %p191 = pneg %p78
        %p192 = pneg %p109
        %p193 = pneg %p106
        %s194 = sand.u32 %s96, 1
        %s195 = scalar_lea.sflag [#allocation4], %s194
        %s196 = sand.u32 %s96, 1
        %s197 = smul.addr %s196, 6
        %s198 = scalar_lea.vmem [#allocation7], %s197
        %v199 = vld [vmem:[%s174] sm:$0x3f]
        %v200 = vld [vmem:[#allocation5] sm:$0x3f]
        %v201 = vadd.f32 %v199, %v200
        %v202 = vlaneseq
        %vm203 = vcmp.ge.s32.totalorder %v202, 0
        %vm204 = vcmp.lt.s32.totalorder %v202, 768
        %vm205 = vmand %vm203, %vm204
        %206 = vst.msk [vmem:[%s198] sm:$0x3f] %vm205, %v201
        %s207 = sand.u32 %s96, 1
        %s208 = scalar_lea.sflag [#allocation4], %s207
        %s209 = sand.u32 %s96, 1
        %s210 = smul.addr %s209, 6
        %s211 = scalar_lea.vmem [#allocation7], %s210
        // Predicated region
        $region37: #{tpu_custom_call.1} parent=27 // pred_check
          %p212 = pneg %p106
        $region38: #{tpu_custom_call.1} parent=27 // pred_check_branch
          %214 = sbr.rel (%p212) target = $region40
        $region39: #{tpu_custom_call.1} parent=27 // pred_region
          %s216 = ssub.s32 96, 96
          %217 = vsyncadd %s208, %s216
          %s218 = smul.addr %s24, 6
          %s219 = smul.addr %s25, 6
          %s220 = sadd.s32 %s218, %s219
          %s221 = smul.addr %s220, 16
          %s222 = scalar_lea.hbm %s2, %s221
          %s224 = sshll.u32 %s211, 4
          %s225 = int_to_ptr.vmem [resolvable:$true] %s224
          %227 = dma.vmem_to_hbm [thread:$0]  %s225, 96, %s222, %s208
        $region40: #{tpu_custom_call.1} parent=27 // pred_fallthru
          _
      $region28: #{tpu_custom_call.1} parent=5 // pred_fallthru
        _
      %p228 = scmp.le.s32.totalorder 2, %s15
      // Predicated region
      $region41: #{tpu_custom_call.1} parent=5 // pred_check
        %p229 = pneg %p228
      $region42: #{tpu_custom_call.1} parent=5 // pred_check_branch
        %231 = sbr.rel (%p229) target = $region44
      $region43: #{tpu_custom_call.1} parent=5 // pred_region
        %s232 = ssub.s32 %s15, 2
        // Predicated region
        $region45: #{tpu_custom_call.1} parent=43 // pred_check
          %p233 = pneg %p112
        $region46: #{tpu_custom_call.1} parent=43 // pred_check_branch
          %235 = sbr.rel (%p233) target = $region48
        $region47: #{tpu_custom_call.1} parent=43 // pred_region
          %s236 = sand.u32 %s97, 1
          %s237 = scalar_lea.sflag [#allocation4], %s236
          %s238 = sand.u32 %s97, 1
          %s239 = smul.addr %s238, 6
          %s240 = scalar_lea.vmem [#allocation7], %s239
          %241 = dma.done %s237, 96
        $region48: #{tpu_custom_call.1} parent=43 // pred_fallthru
          _
      $region44: #{tpu_custom_call.1} parent=5 // pred_fallthru
        _
    $region6: #{tpu_custom_call.1} parent=1 // loop_footer
      %s19 = sadd.s32 1, %s15
    $region7: #{tpu_custom_call.1} parent=1 // loop_footer_branch
      %14 = sbr.rel target = $region3
    $region8: #{tpu_custom_call.1} parent=1 // loop_exit
      _
    %242 = vsyncpa [#allocation3], 1
    %s243 = scalar_lea.sflag [#allocation3], 1
    %244 = vsyncpa %s243, 1
    %245 = vsyncpa [#allocation6], 1
    %246 = vsyncpa [#allocation4], 1
    %s247 = scalar_lea.sflag [#allocation4], 1
    %248 = vsyncpa %s247, 1

</llo_original>
